<compile_context>
chip_gen: v6e
topology: v6e:2x2x1
jax: 0.10.0
libtpu: 0.0.40
codegen_flags: <defaults>
</compile_context>

<pallas_src>
import jax
import jax.numpy as jnp
from jax.experimental import pallas as pl
from jax.experimental.pallas import tpu as pltpu

# ---------------- problem sizes (small, consistent with the module) ----------
C = 3            # image channels
H = 16           # image height
W = 16           # image width
F = 32           # hidden conv channels
L = 68           # number of 2D landmarks (FAN outputs 68 heatmaps)
K = 9 * C        # im2col patch size for a 3x3 conv (27)
KP = 32          # K padded to a lane-friendly width
LP = 128         # L padded to a full lane group
HW = H * W       # 256 spatial positions


# ---------------- Pallas kernel ----------------------------------------------
def fan_landmark_kernel(patches_ref, w1_ref, b1_ref, w2_ref, b2_ref, grid3_ref,
                        out_ref):
    # conv1 (3x3, C->F) as im2col matmul + bias + ReLU     (HW, KP) @ (KP, F)
    x = patches_ref[0]                                             # (HW, KP) bf16
    h = jnp.dot(x, w1_ref[...],
                preferred_element_type=jnp.float32) + b1_ref[...]  # (HW, F) f32
    h = jnp.maximum(h, 0.0)

    # conv2 (1x1, F->L) producing per-landmark heatmaps    (HW, F) @ (F, LP)
    hm = jnp.dot(h.astype(jnp.bfloat16), w2_ref[...],
                 preferred_element_type=jnp.float32) + b2_ref[...]  # (HW, LP) f32

    # spatial soft-argmax per landmark, numerically stabilized (f32 exp/max).
    m = jnp.max(hm, axis=0, keepdims=True)                          # (1, LP)
    e = jnp.exp(hm - m)                                             # (HW, LP)

    # Fused numerator + denominator on the MXU:
    #   rows of grid3 are [x; y; 1]  ->  M = grid3 @ e  is  [sum x*e; sum y*e; sum e]
    M = jnp.dot(grid3_ref[...], e.astype(jnp.bfloat16),
                preferred_element_type=jnp.float32)                 # (3, LP)

    out_ref[0] = M[:2, :] * pl.reciprocal(M[2:3, :], approx=True)   # (2, LP)


def fan_landmarks_pallas(patches, w1, b1, w2, b2, grid3):
    B = patches.shape[0]
    const2 = lambda b: (0, 0)
    return pl.pallas_call(
        fan_landmark_kernel,
        out_shape=jax.ShapeDtypeStruct((B, 2, LP), jnp.float32),
        grid=(B,),
        in_specs=[
            pl.BlockSpec((1, HW, KP), lambda b: (b, 0, 0)),   # per-image patches
            pl.BlockSpec((KP, F), const2),                    # weights stay resident
            pl.BlockSpec((1, F), const2),
            pl.BlockSpec((F, LP), const2),
            pl.BlockSpec((1, LP), const2),
            pl.BlockSpec((3, HW), const2),
        ],
        out_specs=pl.BlockSpec((1, 2, LP), lambda b: (b, 0, 0)),
        compiler_params=pltpu.CompilerParams(
            dimension_semantics=("parallel",)),
    )(patches, w1, b1, w2, b2, grid3)


# ---------------- JAX glue ----------------------------------------------------
def im2col_3x3(x_bchw):
    """(B, C, H, W) -> (B, H*W, KP) bf16 patches for a zero-padded 3x3 conv."""
    B = x_bchw.shape[0]
    x = jnp.transpose(x_bchw, (0, 2, 3, 1))                  # (B, H, W, C)
    xp = jnp.pad(x, ((0, 0), (1, 1), (1, 1), (0, 0)))
    taps = [xp[:, dy:dy + H, dx:dx + W, :] for dy in range(3) for dx in range(3)]
    p = jnp.stack(taps, axis=3).reshape(B, HW, K)            # (B, HW, 9*C)
    p = jnp.pad(p, ((0, 0), (0, 0), (0, KP - K)))            # lane-pad K -> KP
    return p.astype(jnp.bfloat16)


def make_params():
    k = jax.random.PRNGKey(0)
    k1, k2, k3, k4 = jax.random.split(k, 4)
    w1 = jax.random.normal(k1, (K, F), jnp.float32) * 0.05
    b1 = jax.random.normal(k2, (1, F), jnp.float32) * 0.01
    w2 = jax.random.normal(k3, (F, L), jnp.float32) * 0.05
    b2 = jax.random.normal(k4, (1, L), jnp.float32) * 0.01

    # Fold the *255 input scale of the torch forward into w1 (conv is linear).
    w1 = w1 * 255.0

    # Zero-pad to lane-friendly shapes; bf16 MXU operands, f32 biases.
    w1p = jnp.zeros((KP, F), jnp.float32).at[:K, :].set(w1).astype(jnp.bfloat16)
    w2p = jnp.zeros((F, LP), jnp.float32).at[:, :L].set(w2).astype(jnp.bfloat16)
    b2p = jnp.zeros((1, LP), jnp.float32).at[:, :L].set(b2)

    # Coordinate grid, pre-transposed and augmented: rows = [x; y; 1], (3, HW).
    ys, xs = jnp.meshgrid(jnp.arange(H, dtype=jnp.float32),
                          jnp.arange(W, dtype=jnp.float32), indexing='ij')
    grid3 = jnp.stack([xs.reshape(-1), ys.reshape(-1),
                       jnp.ones((HW,), jnp.float32)], axis=0)      # (3, HW)
    return w1p, b1, w2p, b2p, grid3.astype(jnp.bfloat16)


@jax.jit
def face_alignment_forward_batched(images, w1, b1, w2, b2, grid3):
    # images: (B, C, H, W) float32 in [0, 1].
    patches = im2col_3x3(images)                                   # (B, HW, KP)
    out2l = fan_landmarks_pallas(patches, w1, b1, w2, b2, grid3)   # (B, 2, LP)
    return jnp.transpose(out2l[:, :, :L], (0, 2, 1))               # (B, 68, 2)


@jax.jit
def face_alignment_forward(image, w1, b1, w2, b2, grid3):
    # image: (C, H, W) float32 in [0, 1] -- matches the torch module's input.
    return face_alignment_forward_batched(image[None], w1, b1, w2, b2, grid3)[0]


if __name__ == "__main__":
    key = jax.random.PRNGKey(0)
    params = make_params()

    # Batched path (amortizes launch overhead; parallel grid axis on v7x).
    images = jax.random.uniform(key, (2, C, H, W), jnp.float32)    # (B, C, H, W)
    lm_batch = face_alignment_forward_batched(images, *params)
    jax.block_until_ready(lm_batch)
    assert lm_batch.shape == (2, L, 2)
    assert lm_batch.dtype == jnp.float32

    # Single-image path matching the torch module's forward(image) -> (68, 2).
    lm = face_alignment_forward(images[0], *params)
    jax.block_until_ready(lm)
    assert lm.shape == (L, 2)
    assert lm.dtype == jnp.float32

    print("KERNEL_OK")
</pallas_src>

<mosaic_0001>
module attributes {stable_mosaic.version = 11 : i64} {
  func.func @fan_landmark_kernel(%arg0: i32, %arg1: memref<1x256x32xbf16, #tpu.memory_space<vmem>>, %arg2: memref<32x32xbf16, #tpu.memory_space<vmem>>, %arg3: memref<1x32xf32, #tpu.memory_space<vmem>>, %arg4: memref<32x128xbf16, #tpu.memory_space<vmem>>, %arg5: memref<1x128xf32, #tpu.memory_space<vmem>>, %arg6: memref<3x256xbf16, #tpu.memory_space<vmem>>, %arg7: memref<1x2x128xf32, #tpu.memory_space<vmem>>) attributes {dimension_semantics = [#tpu.dimension_semantics<parallel>], iteration_bounds = array<i64: 2>, scalar_prefetch = 0 : i64, scratch_operands = 0 : i64, tpu.core_type = #tpu.core_type<tc>, window_params = [{transform_indices = @transform_0, window_bounds = array<i64: 1, 256, 32>}, {pipeline_mode = #tpu.pipeline_mode<synchronous>, transform_indices = @transform_1, window_bounds = array<i64: 32, 32>}, {pipeline_mode = #tpu.pipeline_mode<synchronous>, transform_indices = @transform_2, window_bounds = array<i64: 1, 32>}, {pipeline_mode = #tpu.pipeline_mode<synchronous>, transform_indices = @transform_3, window_bounds = array<i64: 32, 128>}, {pipeline_mode = #tpu.pipeline_mode<synchronous>, transform_indices = @transform_4, window_bounds = array<i64: 1, 128>}, {pipeline_mode = #tpu.pipeline_mode<synchronous>, transform_indices = @transform_5, window_bounds = array<i64: 3, 256>}, {transform_indices = @transform_6, window_bounds = array<i64: 1, 2, 128>}]} {
    %c0 = arith.constant 0 : index
    %c0_0 = arith.constant 0 : index
    %c0_1 = arith.constant 0 : index
    %0 = vector.load %arg1[%c0, %c0_0, %c0_1] : memref<1x256x32xbf16, #tpu.memory_space<vmem>>, vector<1x256x32xbf16>
    %1 = vector.shape_cast %0 : vector<1x256x32xbf16> to vector<256x32xbf16>
    %c0_2 = arith.constant 0 : index
    %c0_3 = arith.constant 0 : index
    %2 = vector.load %arg2[%c0_2, %c0_3] : memref<32x32xbf16, #tpu.memory_space<vmem>>, vector<32x32xbf16>
    %cst = arith.constant dense<0.000000e+00> : vector<256x32xf32>
    %3 = tpu.matmul %1, %2, %cst {dimension_numbers = #tpu.dot_dimension_numbers<[1], [0], [0], [1], [0, 0, 1, 1], [], []>} : vector<256x32xbf16>, vector<32x32xbf16>, vector<256x32xf32> -> vector<256x32xf32>
    %c0_4 = arith.constant 0 : index
    %c0_5 = arith.constant 0 : index
    %4 = vector.load %arg3[%c0_4, %c0_5] : memref<1x32xf32, #tpu.memory_space<vmem>>, vector<1x32xf32>
    %5 = vector.broadcast %4 : vector<1x32xf32> to vector<256x32xf32>
    %6 = arith.addf %3, %5 : vector<256x32xf32>
    %cst_6 = arith.constant 0.000000e+00 : f32
    %7 = vector.broadcast %cst_6 : f32 to vector<256x32xf32>
    %8 = arith.maximumf %6, %7 : vector<256x32xf32>
    %9 = arith.truncf %8 : vector<256x32xf32> to vector<256x32xbf16>
    %c0_7 = arith.constant 0 : index
    %c0_8 = arith.constant 0 : index
    %10 = vector.load %arg4[%c0_7, %c0_8] : memref<32x128xbf16, #tpu.memory_space<vmem>>, vector<32x128xbf16>
    %cst_9 = arith.constant dense<0.000000e+00> : vector<256x128xf32>
    %11 = tpu.matmul %9, %10, %cst_9 {dimension_numbers = #tpu.dot_dimension_numbers<[1], [0], [0], [1], [0, 0, 1, 1], [], []>} : vector<256x32xbf16>, vector<32x128xbf16>, vector<256x128xf32> -> vector<256x128xf32>
    %c0_10 = arith.constant 0 : index
    %c0_11 = arith.constant 0 : index
    %12 = vector.load %arg5[%c0_10, %c0_11] : memref<1x128xf32, #tpu.memory_space<vmem>>, vector<1x128xf32>
    %13 = vector.broadcast %12 : vector<1x128xf32> to vector<256x128xf32>
    %14 = arith.addf %11, %13 : vector<256x128xf32>
    %cst_12 = arith.constant dense<0xFF800000> : vector<128xf32>
    %15 = vector.multi_reduction <maximumf>, %14, %cst_12 [0] : vector<256x128xf32> to vector<128xf32>
    %16 = vector.shape_cast %15 : vector<128xf32> to vector<1x128xf32>
    %17 = vector.broadcast %16 : vector<1x128xf32> to vector<256x128xf32>
    %18 = arith.subf %14, %17 : vector<256x128xf32>
    %19 = math.exp %18 : vector<256x128xf32>
    %c0_13 = arith.constant 0 : index
    %c0_14 = arith.constant 0 : index
    %20 = vector.load %arg6[%c0_13, %c0_14] : memref<3x256xbf16, #tpu.memory_space<vmem>>, vector<3x256xbf16>
    %21 = arith.truncf %19 : vector<256x128xf32> to vector<256x128xbf16>
    %cst_15 = arith.constant dense<0.000000e+00> : vector<3x128xf32>
    %22 = tpu.matmul %20, %21, %cst_15 {dimension_numbers = #tpu.dot_dimension_numbers<[1], [0], [0], [1], [0, 0, 1, 1], [], []>} : vector<3x256xbf16>, vector<256x128xbf16>, vector<3x128xf32> -> vector<3x128xf32>
    %23 = vector.extract_strided_slice %22 {offsets = [0, 0], sizes = [2, 128], strides = [1, 1]} : vector<3x128xf32> to vector<2x128xf32>
    %24 = vector.extract_strided_slice %22 {offsets = [2, 0], sizes = [1, 128], strides = [1, 1]} : vector<3x128xf32> to vector<1x128xf32>
    %25 = tpu.reciprocal %24 {approx = true} : vector<1x128xf32> -> vector<1x128xf32>
    %26 = vector.broadcast %25 : vector<1x128xf32> to vector<2x128xf32>
    %27 = arith.mulf %23, %26 : vector<2x128xf32>
    %c0_16 = arith.constant 0 : index
    %c0_17 = arith.constant 0 : index
    %c0_18 = arith.constant 0 : index
    %28 = vector.load %arg7[%c0_16, %c0_17, %c0_18] : memref<1x2x128xf32, #tpu.memory_space<vmem>>, vector<1x2x128xf32>
    %29 = vector.shape_cast %28 : vector<1x2x128xf32> to vector<2x128xf32>
    %30 = vector.shape_cast %27 : vector<2x128xf32> to vector<1x2x128xf32>
    tpu.vector_store %arg7[%c0_16, %c0_17, %c0_18], %30 {strides = array<i32>} : memref<1x2x128xf32, #tpu.memory_space<vmem>>, vector<1x2x128xf32>,
    return
  }
  func.func @transform_0(%arg0: i32) -> (i32, i32, i32) {
    %c0_i32 = arith.constant 0 : i32
    %c0_i32_0 = arith.constant 0 : i32
    %c0_i32_1 = arith.constant 0 : i32
    return %arg0, %c0_i32, %c0_i32_0 : i32, i32, i32
  }
  func.func @transform_1(%arg0: i32) -> (i32, i32) {
    %c0_i32 = arith.constant 0 : i32
    %c0_i32_0 = arith.constant 0 : i32
    %c0_i32_1 = arith.constant 0 : i32
    return %c0_i32, %c0_i32_0 : i32, i32
  }
  func.func @transform_2(%arg0: i32) -> (i32, i32) {
    %c0_i32 = arith.constant 0 : i32
    %c0_i32_0 = arith.constant 0 : i32
    %c0_i32_1 = arith.constant 0 : i32
    return %c0_i32, %c0_i32_0 : i32, i32
  }
  func.func @transform_3(%arg0: i32) -> (i32, i32) {
    %c0_i32 = arith.constant 0 : i32
    %c0_i32_0 = arith.constant 0 : i32
    %c0_i32_1 = arith.constant 0 : i32
    return %c0_i32, %c0_i32_0 : i32, i32
  }
  func.func @transform_4(%arg0: i32) -> (i32, i32) {
    %c0_i32 = arith.constant 0 : i32
    %c0_i32_0 = arith.constant 0 : i32
    %c0_i32_1 = arith.constant 0 : i32
    return %c0_i32, %c0_i32_0 : i32, i32
  }
  func.func @transform_5(%arg0: i32) -> (i32, i32) {
    %c0_i32 = arith.constant 0 : i32
    %c0_i32_0 = arith.constant 0 : i32
    %c0_i32_1 = arith.constant 0 : i32
    return %c0_i32, %c0_i32_0 : i32, i32
  }
  func.func @transform_6(%arg0: i32) -> (i32, i32, i32) {
    %c0_i32 = arith.constant 0 : i32
    %c0_i32_0 = arith.constant 0 : i32
    %c0_i32_1 = arith.constant 0 : i32
    return %arg0, %c0_i32, %c0_i32_0 : i32, i32, i32
  }
}

</mosaic_0001>

<llo_original>
// kernel: face_alignment_forward_batched.1
$region0: #{face_alignment_forward_batched.1}
  #allocation0 [shape = 'u32[]', space=smem, size = 0x4, offset = 0x4, fixed_abs, tag = 'smem constant byte address 0x4 - core index']
  #allocation1 [shape = 'u32[144,128]{1,0:T(1,128)}', space=vmem, size = 0x12000, scoped, tag = 'internal scratch']
  %s0 = inlined_call_operand.vmem [shape: bf16[2,256,32], index: 0, kind: input, shape index: {}]
  %s1 = inlined_call_operand.vmem [shape: bf16[32,32], index: 1, kind: input, shape index: {}]
  %s2 = inlined_call_operand.vmem [shape: f32[1,32], index: 2, kind: input, shape index: {}]
  %s3 = inlined_call_operand.vmem [shape: bf16[32,128], index: 3, kind: input, shape index: {}]
  %s4 = inlined_call_operand.vmem [shape: f32[1,128], index: 4, kind: input, shape index: {}]
  %s5 = inlined_call_operand.vmem [shape: bf16[3,256], index: 5, kind: input, shape index: {}]
  %s6 = inlined_call_operand.vmem [shape: f32[2,2,128], index: 6, kind: output, shape index: {}]
  %s7 = sld [smem:[#allocation0]]
  $region57: #{face_alignment_forward_batched.1} parent=0
    _
  %s9 = ssub.s32 1, %s7
  %s10 = scalar_select 0, %s9, %s7
  loop: start=0, step=1, limit=4
  $region2: #{face_alignment_forward_batched.1} parent=0 // loop_pre_header
    _
  $region3: #{face_alignment_forward_batched.1} parent=0 // loop_header
    %s12 = sphi 0, %s16
    %p13 = scmp.ge.s32.totalorder %s12, 4
    %s22 = sphi 0, %s24
    %s25 = sphi 0, %s22
    %s26 = sphi 0, %s25
    %s42 = sphi 0, %s26
    %s46 = sphi 0, %s46
    %s48 = sphi 0, %s46
    %s49 = sphi 0, %s48
    %s63 = sphi 0, %s49
    %s67 = sphi 0, %s67
    %s69 = sphi 0, %s67
    %s70 = sphi 0, %s69
    %s84 = sphi 0, %s70
    %s88 = sphi 0, %s88
    %s90 = sphi 0, %s88
    %s91 = sphi 0, %s90
    %s105 = sphi 0, %s91
    %s109 = sphi 0, %s109
    %s111 = sphi 0, %s109
    %s112 = sphi 0, %s111
    %s126 = sphi 0, %s112
    %s130 = sphi 0, %s130
    %s132 = sphi 0, %s130
    %s133 = sphi 0, %s132
    %s147 = sphi 0, %s133
    %s153 = sphi 0, %s155
    %s156 = sphi 0, %s153
    %s157 = sphi 0, %s156
    %s173 = sphi 0, %s157
  $region4: #{face_alignment_forward_batched.1} parent=0 // loop_header_branch
    %15 = sbr.rel (%p13) target = $region8
  $region5: #{face_alignment_forward_batched.1} parent=0 // loop_body
    %s17 = ssub.s32 %s12, 1
    %s18 = ssub.s32 %s12, 2
    %s19 = sadd.s32 %s12, 1
    %s20 = ssub.s32 %s12, %s19
    %p21 = scmp.eq.s32.totalorder %s20, 0
    %s23 = sadd.s32 %s22, 1
    %s24 = scalar_select %p21, %s22, %s23
    %p27 = pneg %p21
    %p28 = scmp.eq.s32.totalorder %s12, 1
    %p29 = por %p27, %p28
    %p30 = scmp.ne.s32.totalorder %s22, %s25
    %p31 = scmp.eq.s32.totalorder %s12, 0
    %p32 = por %p30, %p31
    %p33 = scmp.ne.s32.totalorder %s22, %s25
    %p34 = scmp.eq.s32.totalorder %s17, 1
    %p35 = por %p33, %p34
    %p36 = scmp.ne.s32.totalorder %s25, %s26
    %p37 = scmp.eq.s32.totalorder %s17, 0
    %p38 = por %p36, %p37
    %p39 = scmp.ne.s32.totalorder %s25, %s26
    %p40 = scmp.eq.s32.totalorder %s18, 1
    %p41 = por %p39, %p40
    %p43 = scmp.ne.s32.totalorder %s26, %s42
    %p44 = scmp.eq.s32.totalorder %s18, 0
    %p45 = por %p43, %p44
    %s47 = sadd.s32 %s46, 1
    %p50 = scmp.eq.s32.totalorder %s12, 1
    %p51 = scmp.ne.s32.totalorder %s46, %s48
    %p52 = scmp.eq.s32.totalorder %s12, 0
    %p53 = por %p51, %p52
    %p54 = scmp.ne.s32.totalorder %s46, %s48
    %p55 = scmp.eq.s32.totalorder %s17, 1
    %p56 = por %p54, %p55
    %p57 = scmp.ne.s32.totalorder %s48, %s49
    %p58 = scmp.eq.s32.totalorder %s17, 0
    %p59 = por %p57, %p58
    %p60 = scmp.ne.s32.totalorder %s48, %s49
    %p61 = scmp.eq.s32.totalorder %s18, 1
    %p62 = por %p60, %p61
    %p64 = scmp.ne.s32.totalorder %s49, %s63
    %p65 = scmp.eq.s32.totalorder %s18, 0
    %p66 = por %p64, %p65
    %s68 = sadd.s32 %s67, 1
    %p71 = scmp.eq.s32.totalorder %s12, 1
    %p72 = scmp.ne.s32.totalorder %s67, %s69
    %p73 = scmp.eq.s32.totalorder %s12, 0
    %p74 = por %p72, %p73
    %p75 = scmp.ne.s32.totalorder %s67, %s69
    %p76 = scmp.eq.s32.totalorder %s17, 1
    %p77 = por %p75, %p76
    %p78 = scmp.ne.s32.totalorder %s69, %s70
    %p79 = scmp.eq.s32.totalorder %s17, 0
    %p80 = por %p78, %p79
    %p81 = scmp.ne.s32.totalorder %s69, %s70
    %p82 = scmp.eq.s32.totalorder %s18, 1
    %p83 = por %p81, %p82
    %p85 = scmp.ne.s32.totalorder %s70, %s84
    %p86 = scmp.eq.s32.totalorder %s18, 0
    %p87 = por %p85, %p86
    %s89 = sadd.s32 %s88, 1
    %p92 = scmp.eq.s32.totalorder %s12, 1
    %p93 = scmp.ne.s32.totalorder %s88, %s90
    %p94 = scmp.eq.s32.totalorder %s12, 0
    %p95 = por %p93, %p94
    %p96 = scmp.ne.s32.totalorder %s88, %s90
    %p97 = scmp.eq.s32.totalorder %s17, 1
    %p98 = por %p96, %p97
    %p99 = scmp.ne.s32.totalorder %s90, %s91
    %p100 = scmp.eq.s32.totalorder %s17, 0
    %p101 = por %p99, %p100
    %p102 = scmp.ne.s32.totalorder %s90, %s91
    %p103 = scmp.eq.s32.totalorder %s18, 1
    %p104 = por %p102, %p103
    %p106 = scmp.ne.s32.totalorder %s91, %s105
    %p107 = scmp.eq.s32.totalorder %s18, 0
    %p108 = por %p106, %p107
    %s110 = sadd.s32 %s109, 1
    %p113 = scmp.eq.s32.totalorder %s12, 1
    %p114 = scmp.ne.s32.totalorder %s109, %s111
    %p115 = scmp.eq.s32.totalorder %s12, 0
    %p116 = por %p114, %p115
    %p117 = scmp.ne.s32.totalorder %s109, %s111
    %p118 = scmp.eq.s32.totalorder %s17, 1
    %p119 = por %p117, %p118
    %p120 = scmp.ne.s32.totalorder %s111, %s112
    %p121 = scmp.eq.s32.totalorder %s17, 0
    %p122 = por %p120, %p121
    %p123 = scmp.ne.s32.totalorder %s111, %s112
    %p124 = scmp.eq.s32.totalorder %s18, 1
    %p125 = por %p123, %p124
    %p127 = scmp.ne.s32.totalorder %s112, %s126
    %p128 = scmp.eq.s32.totalorder %s18, 0
    %p129 = por %p127, %p128
    %s131 = sadd.s32 %s130, 1
    %p134 = scmp.eq.s32.totalorder %s12, 1
    %p135 = scmp.ne.s32.totalorder %s130, %s132
    %p136 = scmp.eq.s32.totalorder %s12, 0
    %p137 = por %p135, %p136
    %p138 = scmp.ne.s32.totalorder %s130, %s132
    %p139 = scmp.eq.s32.totalorder %s17, 1
    %p140 = por %p138, %p139
    %p141 = scmp.ne.s32.totalorder %s132, %s133
    %p142 = scmp.eq.s32.totalorder %s17, 0
    %p143 = por %p141, %p142
    %p144 = scmp.ne.s32.totalorder %s132, %s133
    %p145 = scmp.eq.s32.totalorder %s18, 1
    %p146 = por %p144, %p145
    %p148 = scmp.ne.s32.totalorder %s133, %s147
    %p149 = scmp.eq.s32.totalorder %s18, 0
    %p150 = por %p148, %p149
    %s151 = ssub.s32 %s12, %s19
    %p152 = scmp.eq.s32.totalorder %s151, 0
    %s154 = sadd.s32 %s153, 1
    %s155 = scalar_select %p152, %s153, %s154
    %p158 = pneg %p152
    %p159 = scmp.eq.s32.totalorder %s12, 1
    %p160 = por %p158, %p159
    %p161 = scmp.ne.s32.totalorder %s153, %s156
    %p162 = scmp.eq.s32.totalorder %s12, 0
    %p163 = por %p161, %p162
    %p164 = scmp.ne.s32.totalorder %s153, %s156
    %p165 = scmp.eq.s32.totalorder %s17, 1
    %p166 = por %p164, %p165
    %p167 = scmp.ne.s32.totalorder %s156, %s157
    %p168 = scmp.eq.s32.totalorder %s17, 0
    %p169 = por %p167, %p168
    %p170 = scmp.ne.s32.totalorder %s156, %s157
    %p171 = scmp.eq.s32.totalorder %s18, 1
    %p172 = por %p170, %p171
    %p174 = scmp.ne.s32.totalorder %s157, %s173
    %p175 = scmp.eq.s32.totalorder %s18, 0
    %p176 = por %p174, %p175
    %p177 = scmp.le.s32.totalorder 1, %s12
    %p178 = scmp.lt.s32.totalorder %s12, 3
    %p179 = pnand %p177, %p178
    %p180 = pneg %p179
    // Predicated region
    $region9: #{face_alignment_forward_batched.1} parent=5 // pred_check
      _
    $region10: #{face_alignment_forward_batched.1} parent=5 // pred_check_branch
      %182 = sbr.rel (%p179) target = $region12
    $region11: #{face_alignment_forward_batched.1} parent=5 // pred_region
      %s183 = ssub.s32 %s12, 1
      // Predicated region
      $region13: #{face_alignment_forward_batched.1} parent=11 // pred_check
        %p184 = pneg %p59
      $region14: #{face_alignment_forward_batched.1} parent=11 // pred_check_branch
        %186 = sbr.rel (%p184) target = $region16
      $region15: #{face_alignment_forward_batched.1} parent=11 // pred_region
        _
      $region16: #{face_alignment_forward_batched.1} parent=11 // pred_fallthru
        _
      // Predicated region
      $region17: #{face_alignment_forward_batched.1} parent=11 // pred_check
        %p187 = pneg %p80
      $region18: #{face_alignment_forward_batched.1} parent=11 // pred_check_branch
        %189 = sbr.rel (%p187) target = $region20
      $region19: #{face_alignment_forward_batched.1} parent=11 // pred_region
        _
      $region20: #{face_alignment_forward_batched.1} parent=11 // pred_fallthru
        _
      // Predicated region
      $region21: #{face_alignment_forward_batched.1} parent=11 // pred_check
        %p190 = pneg %p101
      $region22: #{face_alignment_forward_batched.1} parent=11 // pred_check_branch
        %192 = sbr.rel (%p190) target = $region24
      $region23: #{face_alignment_forward_batched.1} parent=11 // pred_region
        _
      $region24: #{face_alignment_forward_batched.1} parent=11 // pred_fallthru
        _
      // Predicated region
      $region25: #{face_alignment_forward_batched.1} parent=11 // pred_check
        %p193 = pneg %p122
      $region26: #{face_alignment_forward_batched.1} parent=11 // pred_check_branch
        %195 = sbr.rel (%p193) target = $region28
      $region27: #{face_alignment_forward_batched.1} parent=11 // pred_region
        _
      $region28: #{face_alignment_forward_batched.1} parent=11 // pred_fallthru
        _
      // Predicated region
      $region29: #{face_alignment_forward_batched.1} parent=11 // pred_check
        %p196 = pneg %p143
      $region30: #{face_alignment_forward_batched.1} parent=11 // pred_check_branch
        %198 = sbr.rel (%p196) target = $region32
      $region31: #{face_alignment_forward_batched.1} parent=11 // pred_region
        _
      $region32: #{face_alignment_forward_batched.1} parent=11 // pred_fallthru
        _
    $region12: #{face_alignment_forward_batched.1} parent=5 // pred_fallthru
      _
    %p199 = scmp.lt.s32.totalorder %s12, 2
    // Predicated region
    $region33: #{face_alignment_forward_batched.1} parent=5 // pred_check
      %p200 = pneg %p199
    $region34: #{face_alignment_forward_batched.1} parent=5 // pred_check_branch
      %202 = sbr.rel (%p200) target = $region36
    $region35: #{face_alignment_forward_batched.1} parent=5 // pred_region
      // Predicated region
      $region37: #{face_alignment_forward_batched.1} parent=35 // pred_check
        %p203 = pneg %p32
      $region38: #{face_alignment_forward_batched.1} parent=35 // pred_check_branch
        %205 = sbr.rel (%p203) target = $region40
      $region39: #{face_alignment_forward_batched.1} parent=35 // pred_region
        %p206 = scmp.lt.s32.totalorder %s12, 1
        %s207 = scalar_select %p206, %s12, 1
        %s208 = smul.addr %s207, 32
        %s209 = smul.addr %s208, 4
        %s210 = scalar_lea.vmem %s0, %s209
      $region40: #{face_alignment_forward_batched.1} parent=35 // pred_fallthru
        _
    $region36: #{face_alignment_forward_batched.1} parent=5 // pred_fallthru
      _
    %p211 = scmp.le.s32.totalorder 1, %s12
    %p212 = scmp.lt.s32.totalorder %s12, 3
    %p213 = pnand %p211, %p212
    %p214 = pneg %p213
    // Predicated region
    $region41: #{face_alignment_forward_batched.1} parent=5 // pred_check
      _
    $region42: #{face_alignment_forward_batched.1} parent=5 // pred_check_branch
      %216 = sbr.rel (%p213) target = $region44
    $region43: #{face_alignment_forward_batched.1} parent=5 // pred_region
      %s217 = ssub.s32 %s12, 1
      %p218 = scmp.lt.s32.totalorder %s17, 1
      %s219 = scalar_select %p218, %s17, 1
      %s220 = smul.addr %s219, 32
      %s221 = smul.addr %s220, 4
      %s222 = scalar_lea.vmem %s0, %s221
      %p223 = pneg %p38
      %p224 = pneg %p35
      %p225 = pneg %p59
      %p226 = pneg %p56
      %p227 = pneg %p80
      %p228 = pneg %p77
      %p229 = pneg %p101
      %p230 = pneg %p98
      %p231 = pneg %p122
      %p232 = pneg %p119
      %p233 = pneg %p143
      %p234 = pneg %p140
      %p235 = pneg %p169
      %p236 = pneg %p166
      %p237 = scmp.lt.s32.totalorder %s17, 1
      %s238 = scalar_select %p237, %s17, 1
      %s239 = smul.addr %s238, 2
      %s240 = scalar_lea.vmem %s6, %s239
      %p241 = scmp.lt.s32.totalorder %s17, 1
      %s242 = scalar_select %p241, %s17, 1
      %s243 = smul.addr %s242, 32
      %s244 = smul.addr %s243, 4
      %s245 = scalar_lea.vmem %s0, %s244
      %p246 = scmp.lt.s32.totalorder %s17, 1
      %s247 = scalar_select %p246, %s17, 1
      %s248 = smul.addr %s247, 2
      %s249 = scalar_lea.vmem %s6, %s248
      %v251 = vld [vmem:[%s245] sm:$0xf]
      %v252 = vld [vmem:[%s245 + $0x4] sm:$0xf]
      %v253 = vld [vmem:[%s245 + $0x8] sm:$0xf]
      %v254 = vld [vmem:[%s245 + $0xc] sm:$0xf]
      %v255 = vld [vmem:[%s245 + $0x10] sm:$0xf]
      %v256 = vld [vmem:[%s245 + $0x14] sm:$0xf]
      %v257 = vld [vmem:[%s245 + $0x18] sm:$0xf]
      %v258 = vld [vmem:[%s245 + $0x1c] sm:$0xf]
      %v259 = vld [vmem:[%s245 + $0x20] sm:$0xf]
      %v260 = vld [vmem:[%s245 + $0x24] sm:$0xf]
      %v261 = vld [vmem:[%s245 + $0x28] sm:$0xf]
      %v262 = vld [vmem:[%s245 + $0x2c] sm:$0xf]
      %v263 = vld [vmem:[%s245 + $0x30] sm:$0xf]
      %v264 = vld [vmem:[%s245 + $0x34] sm:$0xf]
      %v265 = vld [vmem:[%s245 + $0x38] sm:$0xf]
      %v266 = vld [vmem:[%s245 + $0x3c] sm:$0xf]
      %v267 = vld [vmem:[%s245 + $0x40] sm:$0xf]
      %v268 = vld [vmem:[%s245 + $0x44] sm:$0xf]
      %v269 = vld [vmem:[%s245 + $0x48] sm:$0xf]
      %v270 = vld [vmem:[%s245 + $0x4c] sm:$0xf]
      %v271 = vld [vmem:[%s245 + $0x50] sm:$0xf]
      %v272 = vld [vmem:[%s245 + $0x54] sm:$0xf]
      %v273 = vld [vmem:[%s245 + $0x58] sm:$0xf]
      %v274 = vld [vmem:[%s245 + $0x5c] sm:$0xf]
      %v275 = vld [vmem:[%s245 + $0x60] sm:$0xf]
      %v276 = vld [vmem:[%s245 + $0x64] sm:$0xf]
      %v277 = vld [vmem:[%s245 + $0x68] sm:$0xf]
      %v278 = vld [vmem:[%s245 + $0x6c] sm:$0xf]
      %v279 = vld [vmem:[%s245 + $0x70] sm:$0xf]
      %v280 = vld [vmem:[%s245 + $0x74] sm:$0xf]
      %v281 = vld [vmem:[%s245 + $0x78] sm:$0xf]
      %v282 = vld [vmem:[%s245 + $0x7c] sm:$0xf]
      %v283 = vld [vmem:[%s1] sm:$0xf]
      %v284 = vld [vmem:[%s1 + $0x4] sm:$0xf]
      %v285 = vld [vmem:[%s1 + $0x8] sm:$0xf]
      %v286 = vld [vmem:[%s1 + $0xc] sm:$0xf]
      %v287 = vld [vmem:[%s2] sm:$0x1]
      %v289 = vlaneseq
      %v290 = vshrl.u32 %v289, 7
      %v291 = vsub.s32 0, %v290
      %v292 = vrot.slane %v287, %v291
      %v326 = vunpack.c.l.b16 %v251
      %v327 = vunpack.c.l.b16 %v252
      %v328 = vunpack.c.l.b16 %v253
      %v329 = vunpack.c.l.b16 %v254
      %v330 = vunpack.c.l.b16 %v255
      %v331 = vunpack.c.l.b16 %v256
      %v332 = vunpack.c.l.b16 %v257
      %v333 = vunpack.c.l.b16 %v258
      %v334 = vunpack.c.l.b16 %v259
      %v335 = vunpack.c.l.b16 %v260
      %v336 = vunpack.c.l.b16 %v261
      %v337 = vunpack.c.l.b16 %v262
      %v338 = vunpack.c.l.b16 %v263
      %v339 = vunpack.c.l.b16 %v264
      %v340 = vunpack.c.l.b16 %v265
      %v341 = vunpack.c.l.b16 %v266
      %v342 = vunpack.c.l.b16 %v267
      %v343 = vunpack.c.l.b16 %v268
      %v344 = vunpack.c.l.b16 %v269
      %v345 = vunpack.c.l.b16 %v270
      %v346 = vunpack.c.l.b16 %v271
      %v347 = vunpack.c.l.b16 %v272
      %v348 = vunpack.c.l.b16 %v273
      %v349 = vunpack.c.l.b16 %v274
      %v350 = vunpack.c.l.b16 %v275
      %v351 = vunpack.c.l.b16 %v276
      %v352 = vunpack.c.l.b16 %v277
      %v353 = vunpack.c.l.b16 %v278
      %v354 = vunpack.c.l.b16 %v279
      %v355 = vunpack.c.l.b16 %v280
      %v356 = vunpack.c.l.b16 %v281
      %v357 = vunpack.c.l.b16 %v282
      %v358 = vpack.c.b16 %v327, %v326
      %v359 = vpack.c.b16 %v329, %v328
      %v360 = vpack.c.b16 %v331, %v330
      %v361 = vpack.c.b16 %v333, %v332
      %v362 = vpack.c.b16 %v335, %v334
      %v363 = vpack.c.b16 %v337, %v336
      %v364 = vpack.c.b16 %v339, %v338
      %v365 = vpack.c.b16 %v341, %v340
      %v366 = vpack.c.b16 %v343, %v342
      %v367 = vpack.c.b16 %v345, %v344
      %v368 = vpack.c.b16 %v347, %v346
      %v369 = vpack.c.b16 %v349, %v348
      %v370 = vpack.c.b16 %v351, %v350
      %v371 = vpack.c.b16 %v353, %v352
      %v372 = vpack.c.b16 %v355, %v354
      %v373 = vpack.c.b16 %v357, %v356
      %v378 = vunpack.c.l.b16 %v283
      %v379 = vunpack.c.l.b16 %v284
      %v380 = vunpack.c.l.b16 %v285
      %v381 = vunpack.c.l.b16 %v286
      %v382 = vpack.c.b16 %v379, %v378
      %v383 = vpack.c.b16 %v381, %v380
      %vm386 = vcmask 261120
      %v388 = vsel %vm386, %v358, 0
      %v391 = vsel %vm386, %v359, 0
      %v394 = vsel %vm386, %v360, 0
      %v397 = vsel %vm386, %v361, 0
      %v400 = vsel %vm386, %v362, 0
      %v403 = vsel %vm386, %v363, 0
      %v406 = vsel %vm386, %v364, 0
      %v409 = vsel %vm386, %v365, 0
      %v412 = vsel %vm386, %v366, 0
      %v415 = vsel %vm386, %v367, 0
      %v418 = vsel %vm386, %v368, 0
      %v421 = vsel %vm386, %v369, 0
      %v424 = vsel %vm386, %v370, 0
      %v427 = vsel %vm386, %v371, 0
      %v430 = vsel %vm386, %v372, 0
      %v433 = vsel %vm386, %v373, 0
      %435 = vmatprep.subr.bf16.mxu0 0
      %436 = vmatpush1.bf16.msra.mxu0 0
      %437 = vmatprep.subr.bf16.mxu0 0
      %438 = vmatpush1.bf16.msra.mxu0 0
      %439 = vmatprep.subr.bf16.mxu0 0
      %440 = vmatpush1.bf16.msra.mxu0 0
      %441 = vmatprep.subr.bf16.mxu0 0
      %442 = vmatpush1.bf16.msra.mxu0 0
      %443 = vmatprep.subr.bf16.mxu0 0
      %444 = vmatpush1.bf16.msra.mxu0 0
      %445 = vmatprep.subr.bf16.mxu0 0
      %446 = vmatpush1.bf16.msra.mxu0 0
      %447 = vmatprep.subr.bf16.mxu0 0
      %448 = vmatpush1.bf16.msra.mxu0 %v383
      %449 = vmatprep.subr.bf16.mxu0 0
      %450 = vmatpush1.bf16.msra.mxu0 %v382
      %451 = vmatprep.subr.bf16.mxu0 0
      %452 = vmatpush2.bf16.msra.mxu0 0
      %453 = vmatprep.subr.bf16.mxu0 0
      %454 = vmatpush2.bf16.msra.mxu0 0
      %455 = vmatprep.subr.bf16.mxu0 0
      %456 = vmatpush2.bf16.msra.mxu0 0
      %457 = vmatprep.subr.bf16.mxu0 0
      %458 = vmatpush2.bf16.msra.mxu0 0
      %459 = vmatprep.subr.bf16.mxu0 0
      %460 = vmatpush2.bf16.msra.mxu0 0
      %461 = vmatprep.subr.bf16.mxu0 0
      %462 = vmatpush2.bf16.msra.mxu0 0
      %463 = vmatprep.subr.bf16.mxu0 0
      %464 = vmatpush2.bf16.msra.mxu0 0
      %465 = vmatprep.subr.bf16.mxu0 0
      %466 = vmatpush2.bf16.msra.mxu0 0
      %467 = vmatprep.mubr.bf16.mxu0 0
      %468 = vmatmul.mubr.bf16.gmra.mxu0 %v388
      %v469 = vpop.f32.mrf.mxu0
      %v470 = vadd.f32 %v292, %v469
      %v471 = vpop.f32.mrf.mxu0
      %v472 = vpop.f32.mrf.mxu0
      %v473 = vadd.f32 %v292, %v472
      %v474 = vpop.f32.mrf.mxu0
      %475 = vmatprep.mubr.bf16.mxu0 0
      %476 = vmatmul.mubr.bf16.gmra.mxu0 %v391
      %v477 = vpop.f32.mrf.mxu0
      %v478 = vadd.f32 %v292, %v477
      %v479 = vpop.f32.mrf.mxu0
      %v480 = vpop.f32.mrf.mxu0
      %v481 = vadd.f32 %v292, %v480
      %v482 = vpop.f32.mrf.mxu0
      %483 = vmatprep.mubr.bf16.mxu0 0
      %484 = vmatmul.mubr.bf16.gmra.mxu0 %v394
      %v485 = vpop.f32.mrf.mxu0
      %v486 = vadd.f32 %v292, %v485
      %v487 = vpop.f32.mrf.mxu0
      %v488 = vpop.f32.mrf.mxu0
      %v489 = vadd.f32 %v292, %v488
      %v490 = vpop.f32.mrf.mxu0
      %491 = vmatprep.mubr.bf16.mxu0 0
      %492 = vmatmul.mubr.bf16.gmra.mxu0 %v397
      %v493 = vpop.f32.mrf.mxu0
      %v494 = vadd.f32 %v292, %v493
      %v495 = vpop.f32.mrf.mxu0
      %v496 = vpop.f32.mrf.mxu0
      %v497 = vadd.f32 %v292, %v496
      %v498 = vpop.f32.mrf.mxu0
      %499 = vmatprep.mubr.bf16.mxu0 0
      %500 = vmatmul.mubr.bf16.gmra.mxu0 %v400
      %v501 = vpop.f32.mrf.mxu0
      %v502 = vadd.f32 %v292, %v501
      %v503 = vpop.f32.mrf.mxu0
      %v504 = vpop.f32.mrf.mxu0
      %v505 = vadd.f32 %v292, %v504
      %v506 = vpop.f32.mrf.mxu0
      %507 = vmatprep.mubr.bf16.mxu0 0
      %508 = vmatmul.mubr.bf16.gmra.mxu0 %v403
      %v509 = vpop.f32.mrf.mxu0
      %v510 = vadd.f32 %v292, %v509
      %v511 = vpop.f32.mrf.mxu0
      %v512 = vpop.f32.mrf.mxu0
      %v513 = vadd.f32 %v292, %v512
      %v514 = vpop.f32.mrf.mxu0
      %515 = vmatprep.mubr.bf16.mxu0 0
      %516 = vmatmul.mubr.bf16.gmra.mxu0 %v406
      %v517 = vpop.f32.mrf.mxu0
      %v518 = vadd.f32 %v292, %v517
      %v519 = vpop.f32.mrf.mxu0
      %v520 = vpop.f32.mrf.mxu0
      %v521 = vadd.f32 %v292, %v520
      %v522 = vpop.f32.mrf.mxu0
      %523 = vmatprep.mubr.bf16.mxu0 0
      %524 = vmatmul.mubr.bf16.gmra.mxu0 %v409
      %v525 = vpop.f32.mrf.mxu0
      %v526 = vadd.f32 %v292, %v525
      %v527 = vpop.f32.mrf.mxu0
      %v528 = vpop.f32.mrf.mxu0
      %v529 = vadd.f32 %v292, %v528
      %v530 = vpop.f32.mrf.mxu0
      %531 = vmatprep.mubr.bf16.mxu0 0
      %532 = vmatmul.mubr.bf16.gmra.mxu0 %v412
      %v533 = vpop.f32.mrf.mxu0
      %v534 = vadd.f32 %v292, %v533
      %v535 = vpop.f32.mrf.mxu0
      %v536 = vpop.f32.mrf.mxu0
      %v537 = vadd.f32 %v292, %v536
      %v538 = vpop.f32.mrf.mxu0
      %539 = vmatprep.mubr.bf16.mxu0 0
      %540 = vmatmul.mubr.bf16.gmra.mxu0 %v415
      %v541 = vpop.f32.mrf.mxu0
      %v542 = vadd.f32 %v292, %v541
      %v543 = vpop.f32.mrf.mxu0
      %v544 = vpop.f32.mrf.mxu0
      %v545 = vadd.f32 %v292, %v544
      %v546 = vpop.f32.mrf.mxu0
      %547 = vmatprep.mubr.bf16.mxu0 0
      %548 = vmatmul.mubr.bf16.gmra.mxu0 %v418
      %v549 = vpop.f32.mrf.mxu0
      %v550 = vadd.f32 %v292, %v549
      %v551 = vpop.f32.mrf.mxu0
      %v552 = vpop.f32.mrf.mxu0
      %v553 = vadd.f32 %v292, %v552
      %v554 = vpop.f32.mrf.mxu0
      %555 = vmatprep.mubr.bf16.mxu0 0
      %556 = vmatmul.mubr.bf16.gmra.mxu0 %v421
      %v557 = vpop.f32.mrf.mxu0
      %v558 = vadd.f32 %v292, %v557
      %v559 = vpop.f32.mrf.mxu0
      %v560 = vpop.f32.mrf.mxu0
      %v561 = vadd.f32 %v292, %v560
      %v562 = vpop.f32.mrf.mxu0
      %563 = vmatprep.mubr.bf16.mxu0 0
      %564 = vmatmul.mubr.bf16.gmra.mxu0 %v424
      %v565 = vpop.f32.mrf.mxu0
      %v566 = vadd.f32 %v292, %v565
      %v567 = vpop.f32.mrf.mxu0
      %v568 = vpop.f32.mrf.mxu0
      %v569 = vadd.f32 %v292, %v568
      %v570 = vpop.f32.mrf.mxu0
      %571 = vmatprep.mubr.bf16.mxu0 0
      %572 = vmatmul.mubr.bf16.gmra.mxu0 %v427
      %v573 = vpop.f32.mrf.mxu0
      %v574 = vadd.f32 %v292, %v573
      %v575 = vpop.f32.mrf.mxu0
      %v576 = vpop.f32.mrf.mxu0
      %v577 = vadd.f32 %v292, %v576
      %v578 = vpop.f32.mrf.mxu0
      %579 = vmatprep.mubr.bf16.mxu0 0
      %580 = vmatmul.mubr.bf16.gmra.mxu0 %v430
      %v581 = vpop.f32.mrf.mxu0
      %v582 = vadd.f32 %v292, %v581
      %v583 = vpop.f32.mrf.mxu0
      %v584 = vpop.f32.mrf.mxu0
      %v585 = vadd.f32 %v292, %v584
      %v586 = vpop.f32.mrf.mxu0
      %587 = vmatprep.mubr.bf16.mxu0 0
      %588 = vmatmul.mubr.bf16.gmra.mxu0 %v433
      %v589 = vpop.f32.mrf.mxu0
      %v590 = vadd.f32 %v292, %v589
      %v591 = vpop.f32.mrf.mxu0
      %v592 = vpop.f32.mrf.mxu0
      %v593 = vadd.f32 %v292, %v592
      %v594 = vpop.f32.mrf.mxu0
      %595 = vdwg.mxu0
      %v596 = vmax.f32 %v470, 0.0
      %v597 = vmax.f32 %v473, 0.0
      %v598 = vmax.f32 %v478, 0.0
      %v599 = vmax.f32 %v481, 0.0
      %v600 = vmax.f32 %v486, 0.0
      %v601 = vmax.f32 %v489, 0.0
      %v602 = vmax.f32 %v494, 0.0
      %v603 = vmax.f32 %v497, 0.0
      %v604 = vmax.f32 %v502, 0.0
      %v605 = vmax.f32 %v505, 0.0
      %v606 = vmax.f32 %v510, 0.0
      %v607 = vmax.f32 %v513, 0.0
      %v608 = vmax.f32 %v518, 0.0
      %v609 = vmax.f32 %v521, 0.0
      %v610 = vmax.f32 %v526, 0.0
      %v611 = vmax.f32 %v529, 0.0
      %v612 = vmax.f32 %v534, 0.0
      %v613 = vmax.f32 %v537, 0.0
      %v614 = vmax.f32 %v542, 0.0
      %v615 = vmax.f32 %v545, 0.0
      %v616 = vmax.f32 %v550, 0.0
      %v617 = vmax.f32 %v553, 0.0
      %v618 = vmax.f32 %v558, 0.0
      %v619 = vmax.f32 %v561, 0.0
      %v620 = vmax.f32 %v566, 0.0
      %v621 = vmax.f32 %v569, 0.0
      %v622 = vmax.f32 %v574, 0.0
      %v623 = vmax.f32 %v577, 0.0
      %v624 = vmax.f32 %v582, 0.0
      %v625 = vmax.f32 %v585, 0.0
      %v626 = vmax.f32 %v590, 0.0
      %v627 = vmax.f32 %v593, 0.0
      %v628 = vpack.c.bf16 %v597, %v596
      %v629 = vpack.c.bf16 %v599, %v598
      %v630 = vpack.c.bf16 %v601, %v600
      %v631 = vpack.c.bf16 %v603, %v602
      %v632 = vpack.c.bf16 %v605, %v604
      %v633 = vpack.c.bf16 %v607, %v606
      %v634 = vpack.c.bf16 %v609, %v608
      %v635 = vpack.c.bf16 %v611, %v610
      %v636 = vpack.c.bf16 %v613, %v612
      %v637 = vpack.c.bf16 %v615, %v614
      %v638 = vpack.c.bf16 %v617, %v616
      %v639 = vpack.c.bf16 %v619, %v618
      %v640 = vpack.c.bf16 %v621, %v620
      %v641 = vpack.c.bf16 %v623, %v622
      %v642 = vpack.c.bf16 %v625, %v624
      %v643 = vpack.c.bf16 %v627, %v626
      %v644 = vld [vmem:[%s3] sm:$0xf]
      %v645 = vld [vmem:[%s3 + $0x4] sm:$0xf]
      %v646 = vld [vmem:[%s3 + $0x8] sm:$0xf]
      %v647 = vld [vmem:[%s3 + $0xc] sm:$0xf]
      %v648 = vld [vmem:[%s4] sm:$0x1]
      %v650 = vlaneseq
      %v651 = vshrl.u32 %v650, 7
      %v652 = vsub.s32 0, %v651
      %v653 = vrot.slane %v648, %v652
      %v659 = vunpack.c.l.b16 %v644
      %v660 = vunpack.c.l.b16 %v645
      %v661 = vunpack.c.l.b16 %v646
      %v662 = vunpack.c.l.b16 %v647
      %v663 = vpack.c.b16 %v660, %v659
      %v664 = vpack.c.b16 %v662, %v661
      %v668 = vsel %vm386, %v628, 0
      %v671 = vsel %vm386, %v629, 0
      %v674 = vsel %vm386, %v630, 0
      %v677 = vsel %vm386, %v631, 0
      %v680 = vsel %vm386, %v632, 0
      %v683 = vsel %vm386, %v633, 0
      %v686 = vsel %vm386, %v634, 0
      %v689 = vsel %vm386, %v635, 0
      %v692 = vsel %vm386, %v636, 0
      %v695 = vsel %vm386, %v637, 0
      %v698 = vsel %vm386, %v638, 0
      %v701 = vsel %vm386, %v639, 0
      %v704 = vsel %vm386, %v640, 0
      %v707 = vsel %vm386, %v641, 0
      %v710 = vsel %vm386, %v642, 0
      %v713 = vsel %vm386, %v643, 0
      %715 = vmatprep.subr.bf16.mxu0 0
      %716 = vmatpush1.bf16.msra.mxu0 0
      %717 = vmatprep.subr.bf16.mxu0 0
      %718 = vmatpush1.bf16.msra.mxu0 0
      %719 = vmatprep.subr.bf16.mxu0 0
      %720 = vmatpush1.bf16.msra.mxu0 0
      %721 = vmatprep.subr.bf16.mxu0 0
      %722 = vmatpush1.bf16.msra.mxu0 0
      %723 = vmatprep.subr.bf16.mxu0 0
      %724 = vmatpush1.bf16.msra.mxu0 0
      %725 = vmatprep.subr.bf16.mxu0 0
      %726 = vmatpush1.bf16.msra.mxu0 0
      %727 = vmatprep.subr.bf16.mxu0 0
      %728 = vmatpush1.bf16.msra.mxu0 %v664
      %729 = vmatprep.subr.bf16.mxu0 0
      %730 = vmatpush1.bf16.msra.mxu0 %v663
      %731 = vmatprep.subr.bf16.mxu0 0
      %732 = vmatpush2.bf16.msra.mxu0 0
      %733 = vmatprep.subr.bf16.mxu0 0
      %734 = vmatpush2.bf16.msra.mxu0 0
      %735 = vmatprep.subr.bf16.mxu0 0
      %736 = vmatpush2.bf16.msra.mxu0 0
      %737 = vmatprep.subr.bf16.mxu0 0
      %738 = vmatpush2.bf16.msra.mxu0 0
      %739 = vmatprep.subr.bf16.mxu0 0
      %740 = vmatpush2.bf16.msra.mxu0 0
      %741 = vmatprep.subr.bf16.mxu0 0
      %742 = vmatpush2.bf16.msra.mxu0 0
      %743 = vmatprep.subr.bf16.mxu0 0
      %744 = vmatpush2.bf16.msra.mxu0 0
      %745 = vmatprep.subr.bf16.mxu0 0
      %746 = vmatpush2.bf16.msra.mxu0 0
      %747 = vmatprep.mubr.bf16.mxu0 0
      %748 = vmatmul.mubr.bf16.gmra.mxu0 %v668
      %v749 = vpop.f32.mrf.mxu0
      %v750 = vadd.f32 %v653, %v749
      %v751 = vpop.f32.mrf.mxu0
      %v752 = vpop.f32.mrf.mxu0
      %v753 = vadd.f32 %v653, %v752
      %v754 = vpop.f32.mrf.mxu0
      %755 = vmatprep.mubr.bf16.mxu0 0
      %756 = vmatmul.mubr.bf16.gmra.mxu0 %v671
      %v757 = vpop.f32.mrf.mxu0
      %v758 = vadd.f32 %v653, %v757
      %v759 = vpop.f32.mrf.mxu0
      %v760 = vpop.f32.mrf.mxu0
      %v761 = vadd.f32 %v653, %v760
      %v762 = vpop.f32.mrf.mxu0
      %763 = vmatprep.mubr.bf16.mxu0 0
      %764 = vmatmul.mubr.bf16.gmra.mxu0 %v674
      %v765 = vpop.f32.mrf.mxu0
      %v766 = vadd.f32 %v653, %v765
      %v767 = vpop.f32.mrf.mxu0
      %v768 = vpop.f32.mrf.mxu0
      %v769 = vadd.f32 %v653, %v768
      %v770 = vpop.f32.mrf.mxu0
      %771 = vmatprep.mubr.bf16.mxu0 0
      %772 = vmatmul.mubr.bf16.gmra.mxu0 %v677
      %v773 = vpop.f32.mrf.mxu0
      %v774 = vadd.f32 %v653, %v773
      %v775 = vpop.f32.mrf.mxu0
      %v776 = vpop.f32.mrf.mxu0
      %v777 = vadd.f32 %v653, %v776
      %v778 = vpop.f32.mrf.mxu0
      %779 = vmatprep.mubr.bf16.mxu0 0
      %780 = vmatmul.mubr.bf16.gmra.mxu0 %v680
      %v781 = vpop.f32.mrf.mxu0
      %v782 = vadd.f32 %v653, %v781
      %v783 = vpop.f32.mrf.mxu0
      %v784 = vpop.f32.mrf.mxu0
      %v785 = vadd.f32 %v653, %v784
      %v786 = vpop.f32.mrf.mxu0
      %787 = vmatprep.mubr.bf16.mxu0 0
      %788 = vmatmul.mubr.bf16.gmra.mxu0 %v683
      %v789 = vpop.f32.mrf.mxu0
      %v790 = vadd.f32 %v653, %v789
      %v791 = vpop.f32.mrf.mxu0
      %v792 = vpop.f32.mrf.mxu0
      %v793 = vadd.f32 %v653, %v792
      %v794 = vpop.f32.mrf.mxu0
      %795 = vmatprep.mubr.bf16.mxu0 0
      %796 = vmatmul.mubr.bf16.gmra.mxu0 %v686
      %v797 = vpop.f32.mrf.mxu0
      %v798 = vadd.f32 %v653, %v797
      %v799 = vpop.f32.mrf.mxu0
      %v800 = vpop.f32.mrf.mxu0
      %v801 = vadd.f32 %v653, %v800
      %v802 = vpop.f32.mrf.mxu0
      %803 = vmatprep.mubr.bf16.mxu0 0
      %804 = vmatmul.mubr.bf16.gmra.mxu0 %v689
      %v805 = vpop.f32.mrf.mxu0
      %v806 = vadd.f32 %v653, %v805
      %v807 = vpop.f32.mrf.mxu0
      %v808 = vpop.f32.mrf.mxu0
      %v809 = vadd.f32 %v653, %v808
      %v810 = vpop.f32.mrf.mxu0
      %811 = vmatprep.mubr.bf16.mxu0 0
      %812 = vmatmul.mubr.bf16.gmra.mxu0 %v692
      %v813 = vpop.f32.mrf.mxu0
      %v814 = vadd.f32 %v653, %v813
      %v815 = vpop.f32.mrf.mxu0
      %v816 = vpop.f32.mrf.mxu0
      %v817 = vadd.f32 %v653, %v816
      %v818 = vpop.f32.mrf.mxu0
      %819 = vmatprep.mubr.bf16.mxu0 0
      %820 = vmatmul.mubr.bf16.gmra.mxu0 %v695
      %v821 = vpop.f32.mrf.mxu0
      %v822 = vadd.f32 %v653, %v821
      %v823 = vpop.f32.mrf.mxu0
      %v824 = vpop.f32.mrf.mxu0
      %v825 = vadd.f32 %v653, %v824
      %v826 = vpop.f32.mrf.mxu0
      %827 = vmatprep.mubr.bf16.mxu0 0
      %828 = vmatmul.mubr.bf16.gmra.mxu0 %v698
      %v829 = vpop.f32.mrf.mxu0
      %v830 = vadd.f32 %v653, %v829
      %v831 = vpop.f32.mrf.mxu0
      %v832 = vpop.f32.mrf.mxu0
      %v833 = vadd.f32 %v653, %v832
      %v834 = vpop.f32.mrf.mxu0
      %835 = vmatprep.mubr.bf16.mxu0 0
      %836 = vmatmul.mubr.bf16.gmra.mxu0 %v701
      %v837 = vpop.f32.mrf.mxu0
      %v838 = vadd.f32 %v653, %v837
      %v839 = vpop.f32.mrf.mxu0
      %v840 = vpop.f32.mrf.mxu0
      %v841 = vadd.f32 %v653, %v840
      %v842 = vpop.f32.mrf.mxu0
      %843 = vmatprep.mubr.bf16.mxu0 0
      %844 = vmatmul.mubr.bf16.gmra.mxu0 %v704
      %v845 = vpop.f32.mrf.mxu0
      %v846 = vadd.f32 %v653, %v845
      %v847 = vpop.f32.mrf.mxu0
      %v848 = vpop.f32.mrf.mxu0
      %v849 = vadd.f32 %v653, %v848
      %v850 = vpop.f32.mrf.mxu0
      %851 = vmatprep.mubr.bf16.mxu0 0
      %852 = vmatmul.mubr.bf16.gmra.mxu0 %v707
      %v853 = vpop.f32.mrf.mxu0
      %v854 = vadd.f32 %v653, %v853
      %v855 = vpop.f32.mrf.mxu0
      %v856 = vpop.f32.mrf.mxu0
      %v857 = vadd.f32 %v653, %v856
      %v858 = vpop.f32.mrf.mxu0
      %859 = vmatprep.mubr.bf16.mxu0 0
      %860 = vmatmul.mubr.bf16.gmra.mxu0 %v710
      %v861 = vpop.f32.mrf.mxu0
      %v862 = vadd.f32 %v653, %v861
      %v863 = vpop.f32.mrf.mxu0
      %v864 = vpop.f32.mrf.mxu0
      %v865 = vadd.f32 %v653, %v864
      %v866 = vpop.f32.mrf.mxu0
      %867 = vmatprep.mubr.bf16.mxu0 0
      %868 = vmatmul.mubr.bf16.gmra.mxu0 %v713
      %v869 = vpop.f32.mrf.mxu0
      %v870 = vadd.f32 %v653, %v869
      %v871 = vpop.f32.mrf.mxu0
      %v872 = vpop.f32.mrf.mxu0
      %v873 = vadd.f32 %v653, %v872
      %v874 = vpop.f32.mrf.mxu0
      %875 = vdwg.mxu0
      %v876 = vmax.f32 %v750, %v766
      %v877 = vmax.f32 %v753, %v769
      %v878 = vmax.f32 %v758, %v774
      %v879 = vmax.f32 %v761, %v777
      %v880 = vmax.f32 %v876, %v782
      %v881 = vmax.f32 %v877, %v785
      %v882 = vmax.f32 %v878, %v790
      %v883 = vmax.f32 %v879, %v793
      %v884 = vmax.f32 %v880, %v798
      %v885 = vmax.f32 %v881, %v801
      %v886 = vmax.f32 %v882, %v806
      %v887 = vmax.f32 %v883, %v809
      %v888 = vmax.f32 %v884, %v814
      %v889 = vmax.f32 %v885, %v817
      %v890 = vmax.f32 %v886, %v822
      %v891 = vmax.f32 %v887, %v825
      %v892 = vmax.f32 %v888, %v830
      %v893 = vmax.f32 %v889, %v833
      %v894 = vmax.f32 %v890, %v838
      %v895 = vmax.f32 %v891, %v841
      %v896 = vmax.f32 %v892, %v846
      %v897 = vmax.f32 %v893, %v849
      %v898 = vmax.f32 %v894, %v854
      %v899 = vmax.f32 %v895, %v857
      %v900 = vmax.f32 %v896, %v862
      %v901 = vmax.f32 %v897, %v865
      %v902 = vmax.f32 %v898, %v870
      %v903 = vmax.f32 %v899, %v873
      %v904 = vmax.f32 %v900, %v901
      %v905 = vmax.f32 %v902, %v903
      %v906 = vmax.f32 %v904, %v905
      %v907 = vrot.slane %v906, 4
      %v908 = vmax.f32 %v906, %v907
      %v909 = vrot.slane %v908, 2
      %v910 = vmax.f32 %v908, %v909
      %v911 = vrot.slane %v910, 1
      %v912 = vmax.f32 %v910, %v911
      %v913 = vsub.f32 %v750, %v912
      %v914 = vsub.f32 %v753, %v912
      %v915 = vsub.f32 %v758, %v912
      %v916 = vsub.f32 %v761, %v912
      %v917 = vsub.f32 %v766, %v912
      %v918 = vsub.f32 %v769, %v912
      %v919 = vsub.f32 %v774, %v912
      %v920 = vsub.f32 %v777, %v912
      %v921 = vsub.f32 %v782, %v912
      %v922 = vsub.f32 %v785, %v912
      %v923 = vsub.f32 %v790, %v912
      %v924 = vsub.f32 %v793, %v912
      %v925 = vsub.f32 %v798, %v912
      %v926 = vsub.f32 %v801, %v912
      %v927 = vsub.f32 %v806, %v912
      %v928 = vsub.f32 %v809, %v912
      %v929 = vsub.f32 %v814, %v912
      %v930 = vsub.f32 %v817, %v912
      %v931 = vsub.f32 %v822, %v912
      %v932 = vsub.f32 %v825, %v912
      %v933 = vsub.f32 %v830, %v912
      %v934 = vsub.f32 %v833, %v912
      %v935 = vsub.f32 %v838, %v912
      %v936 = vsub.f32 %v841, %v912
      %v937 = vsub.f32 %v846, %v912
      %v938 = vsub.f32 %v849, %v912
      %v939 = vsub.f32 %v854, %v912
      %v940 = vsub.f32 %v857, %v912
      %v941 = vsub.f32 %v862, %v912
      %v942 = vsub.f32 %v865, %v912
      %v943 = vsub.f32 %v870, %v912
      %v944 = vsub.f32 %v873, %v912
      %v945 = vmul.f32 %v913, 1.442695
      %v946 = vpow.pop %v945
      %v947 = vmul.f32 %v914, 1.442695
      %v948 = vpow.pop %v947
      %v949 = vmul.f32 %v915, 1.442695
      %v950 = vpow.pop %v949
      %v951 = vmul.f32 %v916, 1.442695
      %v952 = vpow.pop %v951
      %v953 = vmul.f32 %v917, 1.442695
      %v954 = vpow.pop %v953
      %v955 = vmul.f32 %v918, 1.442695
      %v956 = vpow.pop %v955
      %v957 = vmul.f32 %v919, 1.442695
      %v958 = vpow.pop %v957
      %v959 = vmul.f32 %v920, 1.442695
      %v960 = vpow.pop %v959
      %v961 = vmul.f32 %v921, 1.442695
      %v962 = vpow.pop %v961
      %v963 = vmul.f32 %v922, 1.442695
      %v964 = vpow.pop %v963
      %v965 = vmul.f32 %v923, 1.442695
      %v966 = vpow.pop %v965
      %v967 = vmul.f32 %v924, 1.442695
      %v968 = vpow.pop %v967
      %v969 = vmul.f32 %v925, 1.442695
      %v970 = vpow.pop %v969
      %v971 = vmul.f32 %v926, 1.442695
      %v972 = vpow.pop %v971
      %v973 = vmul.f32 %v927, 1.442695
      %v974 = vpow.pop %v973
      %v975 = vmul.f32 %v928, 1.442695
      %v976 = vpow.pop %v975
      %v977 = vmul.f32 %v929, 1.442695
      %v978 = vpow.pop %v977
      %v979 = vmul.f32 %v930, 1.442695
      %v980 = vpow.pop %v979
      %v981 = vmul.f32 %v931, 1.442695
      %v982 = vpow.pop %v981
      %v983 = vmul.f32 %v932, 1.442695
      %v984 = vpow.pop %v983
      %v985 = vmul.f32 %v933, 1.442695
      %v986 = vpow.pop %v985
      %v987 = vmul.f32 %v934, 1.442695
      %v988 = vpow.pop %v987
      %v989 = vmul.f32 %v935, 1.442695
      %v990 = vpow.pop %v989
      %v991 = vmul.f32 %v936, 1.442695
      %v992 = vpow.pop %v991
      %v993 = vmul.f32 %v937, 1.442695
      %v994 = vpow.pop %v993
      %v995 = vmul.f32 %v938, 1.442695
      %v996 = vpow.pop %v995
      %v997 = vmul.f32 %v939, 1.442695
      %v998 = vpow.pop %v997
      %v999 = vmul.f32 %v940, 1.442695
      %v1000 = vpow.pop %v999
      %v1001 = vmul.f32 %v941, 1.442695
      %v1002 = vpow.pop %v1001
      %v1003 = vmul.f32 %v942, 1.442695
      %v1004 = vpow.pop %v1003
      %v1005 = vmul.f32 %v943, 1.442695
      %v1006 = vpow.pop %v1005
      %v1007 = vmul.f32 %v944, 1.442695
      %v1008 = vpow.pop %v1007
      %v1009 = vld [vmem:[%s5] sm:$0xf]
      %v1010 = vpack.c.bf16 %v948, %v946
      %v1011 = vpack.c.bf16 %v952, %v950
      %v1012 = vpack.c.bf16 %v956, %v954
      %v1013 = vpack.c.bf16 %v960, %v958
      %v1014 = vpack.c.bf16 %v964, %v962
      %v1015 = vpack.c.bf16 %v968, %v966
      %v1016 = vpack.c.bf16 %v972, %v970
      %v1017 = vpack.c.bf16 %v976, %v974
      %v1018 = vpack.c.bf16 %v980, %v978
      %v1019 = vpack.c.bf16 %v984, %v982
      %v1020 = vpack.c.bf16 %v988, %v986
      %v1021 = vpack.c.bf16 %v992, %v990
      %v1022 = vpack.c.bf16 %v996, %v994
      %v1023 = vpack.c.bf16 %v1000, %v998
      %v1024 = vpack.c.bf16 %v1004, %v1002
      %v1025 = vpack.c.bf16 %v1008, %v1006
      %v1028 = vunpack.c.l.s4 1983009808
      %v1029 = vunpack.c.0.s8 %v1028
      %v1030 = vlaneseq
      %v1031 = vshrl.u32 %v1030, 7
      %v1032 = vsub.s32 %v1029, %v1031
      %v1033 = vrot.slane %v1009, %v1032
      %v1034 = vcombine.high %v1033, %v1033
      %1037 = vmatprep.subr.bf16.mxu0 0
      %1038 = vmatpush1.bf16.msra.mxu0 %v1017
      %1039 = vmatprep.subr.bf16.mxu0 0
      %1040 = vmatpush1.bf16.msra.mxu0 %v1016
      %1041 = vmatprep.subr.bf16.mxu0 0
      %1042 = vmatpush1.bf16.msra.mxu0 %v1015
      %1043 = vmatprep.subr.bf16.mxu0 0
      %1044 = vmatpush1.bf16.msra.mxu0 %v1014
      %1045 = vmatprep.subr.bf16.mxu0 0
      %1046 = vmatpush1.bf16.msra.mxu0 %v1013
      %1047 = vmatprep.subr.bf16.mxu0 0
      %1048 = vmatpush1.bf16.msra.mxu0 %v1012
      %1049 = vmatprep.subr.bf16.mxu0 0
      %1050 = vmatpush1.bf16.msra.mxu0 %v1011
      %1051 = vmatprep.subr.bf16.mxu0 0
      %1052 = vmatpush1.bf16.msra.mxu0 %v1010
      %1053 = vmatprep.subr.bf16.mxu0 0
      %1054 = vmatpush2.bf16.msra.mxu0 %v1025
      %1055 = vmatprep.subr.bf16.mxu0 0
      %1056 = vmatpush2.bf16.msra.mxu0 %v1024
      %1057 = vmatprep.subr.bf16.mxu0 0
      %1058 = vmatpush2.bf16.msra.mxu0 %v1023
      %1059 = vmatprep.subr.bf16.mxu0 0
      %1060 = vmatpush2.bf16.msra.mxu0 %v1022
      %1061 = vmatprep.subr.bf16.mxu0 0
      %1062 = vmatpush2.bf16.msra.mxu0 %v1021
      %1063 = vmatprep.subr.bf16.mxu0 0
      %1064 = vmatpush2.bf16.msra.mxu0 %v1020
      %1065 = vmatprep.subr.bf16.mxu0 0
      %1066 = vmatpush2.bf16.msra.mxu0 %v1019
      %1067 = vmatprep.subr.bf16.mxu0 0
      %1068 = vmatpush2.bf16.msra.mxu0 %v1018
      %1069 = vmatprep.mubr.bf16.mxu0 %v1034
      %1070 = vmatmul.mubr.bf16.gmra.mxu0 %v1033
      %v1071 = vpop.f32.mrf.mxu0
      %v1072 = vadd.f32 0.0, %v1071
      %v1073 = vpop.f32.mrf.mxu0
      %v1074 = vpop.f32.mrf.mxu0
      %v1075 = vpop.f32.mrf.mxu0
      %1076 = vdwg.mxu0
      %v1077 = vrcp.pop %v1072
      %v1078 = vlaneseq
      %v1079 = vshrl.u32 %v1078, 7
      %v1080 = vsub.s32 2, %v1079
      %v1081 = vrot.slane %v1077, %v1080
      %v1082 = vmul.f32 %v1072, %v1081
      %1083 = vst [vmem:[%s249] sm:$0x3] %v1082
      %p1084 = scmp.lt.s32.totalorder %s17, 1
      %s1085 = scalar_select %p1084, %s17, 1
      %s1086 = smul.addr %s1085, 2
      %s1087 = scalar_lea.vmem %s6, %s1086
      // Predicated region
      $region45: #{face_alignment_forward_batched.1} parent=43 // pred_check
        %p1088 = pneg %p166
      $region46: #{face_alignment_forward_batched.1} parent=43 // pred_check_branch
        %1090 = sbr.rel (%p1088) target = $region48
      $region47: #{face_alignment_forward_batched.1} parent=43 // pred_region
        _
      $region48: #{face_alignment_forward_batched.1} parent=43 // pred_fallthru
        _
    $region44: #{face_alignment_forward_batched.1} parent=5 // pred_fallthru
      _
    %p1091 = scmp.le.s32.totalorder 2, %s12
    // Predicated region
    $region49: #{face_alignment_forward_batched.1} parent=5 // pred_check
      %p1092 = pneg %p1091
    $region50: #{face_alignment_forward_batched.1} parent=5 // pred_check_branch
      %1094 = sbr.rel (%p1092) target = $region52
    $region51: #{face_alignment_forward_batched.1} parent=5 // pred_region
      %s1095 = ssub.s32 %s12, 2
      // Predicated region
      $region53: #{face_alignment_forward_batched.1} parent=51 // pred_check
        %p1096 = pneg %p172
      $region54: #{face_alignment_forward_batched.1} parent=51 // pred_check_branch
        %1098 = sbr.rel (%p1096) target = $region56
      $region55: #{face_alignment_forward_batched.1} parent=51 // pred_region
        %p1099 = scmp.lt.s32.totalorder %s18, 1
        %s1100 = scalar_select %p1099, %s18, 1
        %s1101 = smul.addr %s1100, 2
        %s1102 = scalar_lea.vmem %s6, %s1101
      $region56: #{face_alignment_forward_batched.1} parent=51 // pred_fallthru
        _
    $region52: #{face_alignment_forward_batched.1} parent=5 // pred_fallthru
      _
  $region6: #{face_alignment_forward_batched.1} parent=0 // loop_footer
    %s16 = sadd.s32 1, %s12
  $region7: #{face_alignment_forward_batched.1} parent=0 // loop_footer_branch
    %11 = sbr.rel target = $region3
  $region8: #{face_alignment_forward_batched.1} parent=0 // loop_exit
    _

</llo_original>
